<compile_context>
chip_gen: v7x
topology: tpu7x:2x2x1
jax: 0.10.0
libtpu: 0.0.40
codegen_flags: <defaults>
</compile_context>

<pallas_src>
import numpy as np

import jax
import jax.numpy as jnp
from jax.experimental import pallas as pl
from jax.experimental.pallas import tpu as pltpu


# --------------------------------------------------------------------------
# Kernel
# --------------------------------------------------------------------------
def _merge_norm_reduce_kernel(x_ref, w_ref, colsum_ref, bias_ref, o_ref):
    """Fused 2x2 patch merge + LayerNorm(4C) + Linear(4C -> Cout, no bias).

    x_ref      : (th, 2, W2, 2C)   input rows [2i, 2i+1], channels (w-parity, C)
    w_ref      : (2, 2C, Coutp)    gamma-folded reduction weight, per h-parity
    colsum_ref : (1, Coutp) f32    sum_K of the folded weight  (= gamma @ W)
    bias_ref   : (1, Coutp) f32    beta @ W
    o_ref      : (th, W2, Coutp)
    """
    th, _, w2, twoc = x_ref.shape
    coutp = o_ref.shape[-1]
    n_tok = th * w2
    inv_k = 1.0 / (2 * twoc)

    even = x_ref[:, 0, :, :].reshape(n_tok, twoc)     # h = 2i   -> [x0 | x2]
    odd = x_ref[:, 1, :, :].reshape(n_tok, twoc)      # h = 2i+1 -> [x1 | x3]

    # Linear with gamma folded into the weight; MXU matmul in the input dtype
    # with f32 accumulation.
    acc = jnp.dot(even, w_ref[0], preferred_element_type=jnp.float32)
    acc = acc + jnp.dot(odd, w_ref[1], preferred_element_type=jnp.float32)

    # One-pass LayerNorm statistics over all 4C merged channels, in f32.
    ef = even.astype(jnp.float32)
    of = odd.astype(jnp.float32)
    s1 = jnp.sum(ef, axis=-1, keepdims=True) + jnp.sum(of, axis=-1, keepdims=True)
    s2 = (jnp.sum(ef * ef, axis=-1, keepdims=True)
          + jnp.sum(of * of, axis=-1, keepdims=True))
    mean = s1 * inv_k
    var = jnp.maximum(s2 * inv_k - mean * mean, 0.0)
    inv_std = jax.lax.rsqrt(var + 1e-5)

    # y = ((x - mean)*inv_std*gamma + beta) @ W
    #   = (x @ (gamma*W) - mean * colsum) * inv_std + beta @ W
    y = (acc - mean * colsum_ref[...]) * inv_std + bias_ref[...]
    o_ref[...] = y.reshape(th, w2, coutp).astype(o_ref.dtype)


# --------------------------------------------------------------------------
# Tiling heuristics
# --------------------------------------------------------------------------
def _vmem_budget_and_limit():
    """Generation-aware VMEM budget (v7x has 64 MiB, v5e/v6e have 128 MiB)."""
    cap = 64 << 20  # conservative fallback (safe on every generation)
    try:
        info = pltpu.get_tpu_info()
        cap = int(getattr(info, "vmem_capacity_bytes", cap) or cap)
    except Exception:
        pass
    budget = max(16 << 20, int(cap * 0.40))
    limit = max(budget + (8 << 20), int(cap * 0.70))
    return budget, limit


def _pick_rows_per_block(rows, w2, c, cout_pad, itemsize, vmem_budget,
                         target_tokens=16384):
    """Output rows (= pairs of input rows) handled per grid step."""
    # dbl-buffered input/output DMA blocks + f32 temps (casts, acc, epilogue)
    per_token = 2 * (4 * c + cout_pad) * itemsize + 16 * c + 12 * cout_pad
    weight_bytes = 2 * (4 * c) * cout_pad * itemsize + 16 * cout_pad
    avail = max(vmem_budget - weight_bytes, per_token * w2)
    tokens = max(w2, min(target_tokens, avail // per_token))
    th = max(1, min(rows, tokens // w2))
    if rows >= 2:                       # >=2 grid blocks so both v7x TCs get work
        th = min(th, pl.cdiv(rows, 2))
    return th


# --------------------------------------------------------------------------
# Parameter preparation (hoist this out of the per-step forward)
# --------------------------------------------------------------------------
def prepare_patch_merging_params(gamma, beta, w_reduction, *, x_dtype,
                                 mxu_dtype=None):
    """Fold LayerNorm params into the reduction weight, permute to the
    in-kernel merged channel order [x0, x2 | x1, x3], and (optionally)
    zero-pad the output channels to a lane-dense multiple of 128."""
    K = int(gamma.shape[0])
    C = K // 4
    Cout = int(w_reduction.shape[0])

    # kernel channel order [x0, x2, x1, x3] vs PyTorch concat [x0, x1, x2, x3]
    perm = np.concatenate([np.arange(0, C), np.arange(2 * C, 3 * C),
                           np.arange(C, 2 * C), np.arange(3 * C, 4 * C)])

    w_p = jnp.transpose(w_reduction[:, perm]).astype(jnp.float32)     # (4C, Cout)
    gamma_p = gamma[perm].astype(jnp.float32)
    beta_p = beta[perm].astype(jnp.float32)

    w_fold = gamma_p[:, None] * w_p                                    # (4C, Cout)
    colsum = jnp.sum(w_fold, axis=0)                                   # (Cout,)
    bias = beta_p @ w_p                                                # (Cout,)

    # Lane-dense output stores when the padding overhead is modest (<= 50%).
    cout_pad = Cout
    if Cout % 128:
        padded = -(-Cout // 128) * 128
        if 2 * padded <= 3 * Cout:
            cout_pad = padded
    if cout_pad != Cout:
        pad = cout_pad - Cout
        w_fold = jnp.pad(w_fold, ((0, 0), (0, pad)))
        colsum = jnp.pad(colsum, (0, pad))
        bias = jnp.pad(bias, (0, pad))

    # TODO(synk): on v5e with f32 activations, pass mxu_dtype=jnp.bfloat16 (and
    # cast x) to keep the MXU in its fast bf16 mode; kept exact here.
    mxu_dtype = mxu_dtype or x_dtype
    return dict(
        w=w_fold.reshape(2, 2 * C, cout_pad).astype(mxu_dtype),
        colsum=colsum.reshape(1, cout_pad).astype(jnp.float32),
        bias=bias.reshape(1, cout_pad).astype(jnp.float32),
        C=C, Cout=Cout, cout_pad=cout_pad)


# --------------------------------------------------------------------------
# Forward pass
# --------------------------------------------------------------------------
def patch_merging2d_apply(x, params):
    """x: (B, H, W, C) -> (B, ceil(H/2), ceil(W/2), Cout)."""
    B, H, W, C = x.shape
    assert C == params["C"], (C, params["C"])
    if (H % 2) or (W % 2):
        # TODO(synk): odd-H/W edge pad stays as a (rare) wrapper-side copy.
        x = jnp.pad(x, ((0, 0), (0, H % 2), (0, W % 2), (0, 0)))
    H2, W2 = x.shape[1] // 2, x.shape[2] // 2
    rows = B * H2
    Cout, cout_pad = params["Cout"], params["cout_pad"]
    K = 4 * C

    # Free, contiguous view: (B*H2, h-parity, W2, w-parity*C). No HBM copy.
    xv = x.reshape(rows, 2, W2, 2 * C)

    itemsize = jnp.dtype(x.dtype).itemsize
    vmem_budget, vmem_limit = _vmem_budget_and_limit()
    th = _pick_rows_per_block(rows, W2, C, cout_pad, itemsize, vmem_budget)
    grid = (pl.cdiv(rows, th),)          # ragged last block, no divisor collapse

    tokens = rows * W2
    cost = pl.CostEstimate(
        flops=2 * tokens * K * cout_pad + 8 * tokens * K,
        transcendentals=tokens,
        bytes_accessed=(tokens * (K + cout_pad) + 2 * K * cout_pad) * itemsize)

    out = pl.pallas_call(
        _merge_norm_reduce_kernel,
        out_shape=jax.ShapeDtypeStruct((rows, W2, cout_pad), x.dtype),
        grid_spec=pltpu.PrefetchScalarGridSpec(
            num_scalar_prefetch=0,
            grid=grid,
            in_specs=[
                # one DMA per step for both h-parities of the row block
                pl.BlockSpec((th, 2, W2, 2 * C), lambda i: (i, 0, 0, 0)),
                pl.BlockSpec((2, 2 * C, cout_pad), lambda i: (0, 0, 0)),
                pl.BlockSpec((1, cout_pad), lambda i: (0, 0)),
                pl.BlockSpec((1, cout_pad), lambda i: (0, 0)),
            ],
            out_specs=pl.BlockSpec((th, W2, cout_pad), lambda i: (i, 0, 0)),
        ),
        compiler_params=pltpu.CompilerParams(
            dimension_semantics=("parallel",),
            vmem_limit_bytes=vmem_limit,
        ),
        cost_estimate=cost,
    )(xv, params["w"], params["colsum"], params["bias"])

    if cout_pad != Cout:
        out = out[:, :, :Cout]
    return out.reshape(B, H2, W2, Cout)


def patch_merging2d(x, gamma, beta, w_reduction):
    """Convenience one-shot wrapper (param prep + apply).

    x:            (B, H, W, C)
    gamma, beta:  (4*C,)        LayerNorm params
    w_reduction:  (Cout, 4*C)   nn.Linear weight (PyTorch layout), bias-free
    """
    params = prepare_patch_merging_params(gamma, beta, w_reduction,
                                          x_dtype=x.dtype)
    return patch_merging2d_apply(x, params)


# --------------------------------------------------------------------------
# Pure-JAX reference (mirrors the PyTorch module)
# --------------------------------------------------------------------------
def _reference(x, gamma, beta, w_reduction):
    B, H, W, C = x.shape
    if (H % 2) or (W % 2):
        x = jnp.pad(x, ((0, 0), (0, H % 2), (0, W % 2), (0, 0)))
    x0 = x[:, 0::2, 0::2, :]
    x1 = x[:, 1::2, 0::2, :]
    x2 = x[:, 0::2, 1::2, :]
    x3 = x[:, 1::2, 1::2, :]
    xm = jnp.concatenate([x0, x1, x2, x3], axis=-1).astype(jnp.float32)
    mean = jnp.mean(xm, axis=-1, keepdims=True)
    var = jnp.mean((xm - mean) ** 2, axis=-1, keepdims=True)
    xn = (xm - mean) / jnp.sqrt(var + 1e-5) * gamma + beta
    return jnp.einsum("bhwk,ok->bhwo", xn, w_reduction.astype(jnp.float32))


if __name__ == "__main__":
    key = jax.random.PRNGKey(0)
    B, C, H, W = 2, 4, 16, 16          # dim = 4 -> 4*dim = 16, out_dim = 2*dim = 8
    k_x, k_w, k_g, k_b = jax.random.split(key, 4)

    x = jax.random.normal(k_x, (B, H, W, C), dtype=jnp.float32)

    # deterministic parameters (shapes match the module; random gamma/beta
    # exercise the channel-permutation + gamma-fold path)
    gamma = 1.0 + 0.1 * jax.random.normal(k_g, (4 * C,), dtype=jnp.float32)
    beta = 0.1 * jax.random.normal(k_b, (4 * C,), dtype=jnp.float32)
    w_reduction = (jax.random.normal(k_w, (2 * C, 4 * C), dtype=jnp.float32)
                   * (1.0 / (4 * C) ** 0.5))     # Linear(4C -> 2C, bias=False)

    out = jax.block_until_ready(patch_merging2d(x, gamma, beta, w_reduction))
    ref = _reference(x, gamma, beta, w_reduction)

    assert out.shape == (B, H // 2, W // 2, 2 * C), out.shape
    assert jnp.allclose(out, ref.astype(out.dtype), atol=2e-4, rtol=2e-4), (
        float(jnp.max(jnp.abs(out - ref))))

    print("KERNEL_OK")
</pallas_src>

<mosaic_0001>
module attributes {stable_mosaic.version = 11 : i64} {
  func.func @_merge_norm_reduce_kernel(%arg0: i32, %arg1: memref<8x2x8x8xf32, #tpu.memory_space<vmem>>, %arg2: memref<2x8x8xf32, #tpu.memory_space<vmem>>, %arg3: memref<1x8xf32, #tpu.memory_space<vmem>>, %arg4: memref<1x8xf32, #tpu.memory_space<vmem>>, %arg5: memref<8x8x8xf32, #tpu.memory_space<vmem>>) attributes {dimension_semantics = [#tpu.dimension_semantics<parallel>], iteration_bounds = array<i64: 2>, scalar_prefetch = 0 : i64, scratch_operands = 0 : i64, tpu.core_type = #tpu.core_type<tc>, window_params = [{transform_indices = @transform_0, window_bounds = array<i64: 8, 2, 8, 8>}, {pipeline_mode = #tpu.pipeline_mode<synchronous>, transform_indices = @transform_1, window_bounds = array<i64: 2, 8, 8>}, {pipeline_mode = #tpu.pipeline_mode<synchronous>, transform_indices = @transform_2, window_bounds = array<i64: 1, 8>}, {pipeline_mode = #tpu.pipeline_mode<synchronous>, transform_indices = @transform_3, window_bounds = array<i64: 1, 8>}, {transform_indices = @transform_4, window_bounds = array<i64: 8, 8, 8>}]} {
    %c0 = arith.constant 0 : index
    %c0_0 = arith.constant 0 : index
    %c0_1 = arith.constant 0 : index
    %c0_2 = arith.constant 0 : index
    %0 = vector.load %arg1[%c0, %c0_0, %c0_1, %c0_2] : memref<8x2x8x8xf32, #tpu.memory_space<vmem>>, vector<8x1x8x8xf32>
    %1 = vector.shape_cast %0 : vector<8x1x8x8xf32> to vector<8x8x8xf32>
    %2 = vector.shape_cast %1 : vector<8x8x8xf32> to vector<64x8xf32>
    %c0_3 = arith.constant 0 : index
    %c1 = arith.constant 1 : index
    %c0_4 = arith.constant 0 : index
    %c0_5 = arith.constant 0 : index
    %3 = vector.load %arg1[%c0_3, %c1, %c0_4, %c0_5] : memref<8x2x8x8xf32, #tpu.memory_space<vmem>>, vector<8x1x8x8xf32>
    %4 = vector.shape_cast %3 : vector<8x1x8x8xf32> to vector<8x8x8xf32>
    %5 = vector.shape_cast %4 : vector<8x8x8xf32> to vector<64x8xf32>
    %c0_6 = arith.constant 0 : index
    %c0_7 = arith.constant 0 : index
    %c0_8 = arith.constant 0 : index
    %6 = vector.load %arg2[%c0_6, %c0_7, %c0_8] : memref<2x8x8xf32, #tpu.memory_space<vmem>>, vector<1x8x8xf32>
    %7 = vector.shape_cast %6 : vector<1x8x8xf32> to vector<8x8xf32>
    %cst = arith.constant dense<0.000000e+00> : vector<64x8xf32>
    %8 = tpu.matmul %2, %7, %cst {dimension_numbers = #tpu.dot_dimension_numbers<[1], [0], [0], [1], [0, 0, 1, 1], [], []>} : vector<64x8xf32>, vector<8x8xf32>, vector<64x8xf32> -> vector<64x8xf32>
    %c1_9 = arith.constant 1 : index
    %c0_10 = arith.constant 0 : index
    %c0_11 = arith.constant 0 : index
    %9 = vector.load %arg2[%c1_9, %c0_10, %c0_11] : memref<2x8x8xf32, #tpu.memory_space<vmem>>, vector<1x8x8xf32>
    %10 = vector.shape_cast %9 : vector<1x8x8xf32> to vector<8x8xf32>
    %cst_12 = arith.constant dense<0.000000e+00> : vector<64x8xf32>
    %11 = tpu.matmul %5, %10, %cst_12 {dimension_numbers = #tpu.dot_dimension_numbers<[1], [0], [0], [1], [0, 0, 1, 1], [], []>} : vector<64x8xf32>, vector<8x8xf32>, vector<64x8xf32> -> vector<64x8xf32>
    %12 = arith.addf %8, %11 : vector<64x8xf32>
    %cst_13 = arith.constant dense<0.000000e+00> : vector<64xf32>
    %13 = vector.multi_reduction <add>, %2, %cst_13 [1] : vector<64x8xf32> to vector<64xf32>
    %14 = vector.shape_cast %13 : vector<64xf32> to vector<64x1xf32>
    %cst_14 = arith.constant dense<0.000000e+00> : vector<64xf32>
    %15 = vector.multi_reduction <add>, %5, %cst_14 [1] : vector<64x8xf32> to vector<64xf32>
    %16 = vector.shape_cast %15 : vector<64xf32> to vector<64x1xf32>
    %17 = arith.addf %14, %16 : vector<64x1xf32>
    %18 = arith.mulf %2, %2 : vector<64x8xf32>
    %cst_15 = arith.constant dense<0.000000e+00> : vector<64xf32>
    %19 = vector.multi_reduction <add>, %18, %cst_15 [1] : vector<64x8xf32> to vector<64xf32>
    %20 = vector.shape_cast %19 : vector<64xf32> to vector<64x1xf32>
    %21 = arith.mulf %5, %5 : vector<64x8xf32>
    %cst_16 = arith.constant dense<0.000000e+00> : vector<64xf32>
    %22 = vector.multi_reduction <add>, %21, %cst_16 [1] : vector<64x8xf32> to vector<64xf32>
    %23 = vector.shape_cast %22 : vector<64xf32> to vector<64x1xf32>
    %24 = arith.addf %20, %23 : vector<64x1xf32>
    %cst_17 = arith.constant 6.250000e-02 : f32
    %25 = vector.broadcast %cst_17 : f32 to vector<64x1xf32>
    %26 = arith.mulf %17, %25 : vector<64x1xf32>
    %cst_18 = arith.constant 6.250000e-02 : f32
    %27 = vector.broadcast %cst_18 : f32 to vector<64x1xf32>
    %28 = arith.mulf %24, %27 : vector<64x1xf32>
    %29 = arith.mulf %26, %26 : vector<64x1xf32>
    %30 = arith.subf %28, %29 : vector<64x1xf32>
    %cst_19 = arith.constant 0.000000e+00 : f32
    %31 = vector.broadcast %cst_19 : f32 to vector<64x1xf32>
    %32 = arith.maximumf %30, %31 : vector<64x1xf32>
    %cst_20 = arith.constant 9.99999974E-6 : f32
    %33 = vector.broadcast %cst_20 : f32 to vector<64x1xf32>
    %34 = arith.addf %32, %33 : vector<64x1xf32>
    %35 = math.rsqrt %34 : vector<64x1xf32>
    %c0_21 = arith.constant 0 : index
    %c0_22 = arith.constant 0 : index
    %36 = vector.load %arg3[%c0_21, %c0_22] : memref<1x8xf32, #tpu.memory_space<vmem>>, vector<1x8xf32>
    %37 = vector.broadcast %26 : vector<64x1xf32> to vector<64x8xf32>
    %38 = vector.broadcast %36 : vector<1x8xf32> to vector<64x8xf32>
    %39 = arith.mulf %37, %38 : vector<64x8xf32>
    %40 = arith.subf %12, %39 : vector<64x8xf32>
    %41 = vector.broadcast %35 : vector<64x1xf32> to vector<64x8xf32>
    %42 = arith.mulf %40, %41 : vector<64x8xf32>
    %c0_23 = arith.constant 0 : index
    %c0_24 = arith.constant 0 : index
    %43 = vector.load %arg4[%c0_23, %c0_24] : memref<1x8xf32, #tpu.memory_space<vmem>>, vector<1x8xf32>
    %44 = vector.broadcast %43 : vector<1x8xf32> to vector<64x8xf32>
    %45 = arith.addf %42, %44 : vector<64x8xf32>
    %46 = vector.shape_cast %45 : vector<64x8xf32> to vector<8x8x8xf32>
    %c0_25 = arith.constant 0 : index
    %c0_26 = arith.constant 0 : index
    %c0_27 = arith.constant 0 : index
    %47 = vector.load %arg5[%c0_25, %c0_26, %c0_27] : memref<8x8x8xf32, #tpu.memory_space<vmem>>, vector<8x8x8xf32>
    tpu.vector_store %arg5[%c0_25, %c0_26, %c0_27], %46 {strides = array<i32>} : memref<8x8x8xf32, #tpu.memory_space<vmem>>, vector<8x8x8xf32>,
    return
  }
  func.func @transform_0(%arg0: i32) -> (i32, i32, i32, i32) {
    %c0_i32 = arith.constant 0 : i32
    %c0_i32_0 = arith.constant 0 : i32
    %c0_i32_1 = arith.constant 0 : i32
    %c0_i32_2 = arith.constant 0 : i32
    return %arg0, %c0_i32, %c0_i32_0, %c0_i32_1 : i32, i32, i32, i32
  }
  func.func @transform_1(%arg0: i32) -> (i32, i32, i32) {
    %c0_i32 = arith.constant 0 : i32
    %c0_i32_0 = arith.constant 0 : i32
    %c0_i32_1 = arith.constant 0 : i32
    %c0_i32_2 = arith.constant 0 : i32
    return %c0_i32, %c0_i32_0, %c0_i32_1 : i32, i32, i32
  }
  func.func @transform_2(%arg0: i32) -> (i32, i32) {
    %c0_i32 = arith.constant 0 : i32
    %c0_i32_0 = arith.constant 0 : i32
    %c0_i32_1 = arith.constant 0 : i32
    return %c0_i32, %c0_i32_0 : i32, i32
  }
  func.func @transform_3(%arg0: i32) -> (i32, i32) {
    %c0_i32 = arith.constant 0 : i32
    %c0_i32_0 = arith.constant 0 : i32
    %c0_i32_1 = arith.constant 0 : i32
    return %c0_i32, %c0_i32_0 : i32, i32
  }
  func.func @transform_4(%arg0: i32) -> (i32, i32, i32) {
    %c0_i32 = arith.constant 0 : i32
    %c0_i32_0 = arith.constant 0 : i32
    %c0_i32_1 = arith.constant 0 : i32
    return %arg0, %c0_i32, %c0_i32_0 : i32, i32, i32
  }
}

</mosaic_0001>

<llo_original>
// kernel: tpu_custom_call.1
$region0: #{tpu_custom_call.1}
  #allocation0 [shape = 'u32[]', space=smem, size = 0x4, offset = 0x4, fixed_abs, tag = 'smem constant byte address 0x4 - core index']
  #allocation1 [shape = 'u32[144,128]{1,0:T(1,128)}', space=vmem, size = 0x12000, scoped, tag = 'internal scratch']
  %s0 = inlined_call_operand.vmem [shape: f32[16,2,8,8], index: 0, kind: input, shape index: {}]
  %s1 = inlined_call_operand.vmem [shape: f32[2,8,8], index: 1, kind: input, shape index: {}]
  %s2 = inlined_call_operand.vmem [shape: f32[1,8], index: 2, kind: input, shape index: {}]
  %s3 = inlined_call_operand.vmem [shape: f32[1,8], index: 3, kind: input, shape index: {}]
  %s4 = inlined_call_operand.vmem [shape: f32[16,8,8], index: 4, kind: output, shape index: {}]
  %s5 = sld [smem:[#allocation0]]
  $region49: #{tpu_custom_call.1} parent=0
    _
  %s7 = ssub.s32 1, %s5
  %s8 = scalar_select 0, %s7, %s5
  loop: start=0, step=1, limit=4
  $region2: #{tpu_custom_call.1} parent=0 // loop_pre_header
    _
  $region3: #{tpu_custom_call.1} parent=0 // loop_header
    %s10 = sphi 0, %s14
    %p11 = scmp.ge.s32.totalorder %s10, 4
    %s20 = sphi 0, %s22
    %s23 = sphi 0, %s20
    %s24 = sphi 0, %s23
    %s40 = sphi 0, %s24
    %s44 = sphi 0, %s44
    %s46 = sphi 0, %s44
    %s47 = sphi 0, %s46
    %s61 = sphi 0, %s47
    %s65 = sphi 0, %s65
    %s67 = sphi 0, %s65
    %s68 = sphi 0, %s67
    %s82 = sphi 0, %s68
    %s86 = sphi 0, %s86
    %s88 = sphi 0, %s86
    %s89 = sphi 0, %s88
    %s103 = sphi 0, %s89
    %s109 = sphi 0, %s111
    %s112 = sphi 0, %s109
    %s113 = sphi 0, %s112
    %s129 = sphi 0, %s113
  $region4: #{tpu_custom_call.1} parent=0 // loop_header_branch
    %13 = sbr.rel (%p11) target = $region8
  $region5: #{tpu_custom_call.1} parent=0 // loop_body
    %s15 = ssub.s32 %s10, 1
    %s16 = ssub.s32 %s10, 2
    %s17 = sadd.s32 %s10, 1
    %s18 = ssub.s32 %s10, %s17
    %p19 = scmp.eq.s32.totalorder %s18, 0
    %s21 = sadd.s32 %s20, 1
    %s22 = scalar_select %p19, %s20, %s21
    %p25 = pneg %p19
    %p26 = scmp.eq.s32.totalorder %s10, 1
    %p27 = por %p25, %p26
    %p28 = scmp.ne.s32.totalorder %s20, %s23
    %p29 = scmp.eq.s32.totalorder %s10, 0
    %p30 = por %p28, %p29
    %p31 = scmp.ne.s32.totalorder %s20, %s23
    %p32 = scmp.eq.s32.totalorder %s15, 1
    %p33 = por %p31, %p32
    %p34 = scmp.ne.s32.totalorder %s23, %s24
    %p35 = scmp.eq.s32.totalorder %s15, 0
    %p36 = por %p34, %p35
    %p37 = scmp.ne.s32.totalorder %s23, %s24
    %p38 = scmp.eq.s32.totalorder %s16, 1
    %p39 = por %p37, %p38
    %p41 = scmp.ne.s32.totalorder %s24, %s40
    %p42 = scmp.eq.s32.totalorder %s16, 0
    %p43 = por %p41, %p42
    %s45 = sadd.s32 %s44, 1
    %p48 = scmp.eq.s32.totalorder %s10, 1
    %p49 = scmp.ne.s32.totalorder %s44, %s46
    %p50 = scmp.eq.s32.totalorder %s10, 0
    %p51 = por %p49, %p50
    %p52 = scmp.ne.s32.totalorder %s44, %s46
    %p53 = scmp.eq.s32.totalorder %s15, 1
    %p54 = por %p52, %p53
    %p55 = scmp.ne.s32.totalorder %s46, %s47
    %p56 = scmp.eq.s32.totalorder %s15, 0
    %p57 = por %p55, %p56
    %p58 = scmp.ne.s32.totalorder %s46, %s47
    %p59 = scmp.eq.s32.totalorder %s16, 1
    %p60 = por %p58, %p59
    %p62 = scmp.ne.s32.totalorder %s47, %s61
    %p63 = scmp.eq.s32.totalorder %s16, 0
    %p64 = por %p62, %p63
    %s66 = sadd.s32 %s65, 1
    %p69 = scmp.eq.s32.totalorder %s10, 1
    %p70 = scmp.ne.s32.totalorder %s65, %s67
    %p71 = scmp.eq.s32.totalorder %s10, 0
    %p72 = por %p70, %p71
    %p73 = scmp.ne.s32.totalorder %s65, %s67
    %p74 = scmp.eq.s32.totalorder %s15, 1
    %p75 = por %p73, %p74
    %p76 = scmp.ne.s32.totalorder %s67, %s68
    %p77 = scmp.eq.s32.totalorder %s15, 0
    %p78 = por %p76, %p77
    %p79 = scmp.ne.s32.totalorder %s67, %s68
    %p80 = scmp.eq.s32.totalorder %s16, 1
    %p81 = por %p79, %p80
    %p83 = scmp.ne.s32.totalorder %s68, %s82
    %p84 = scmp.eq.s32.totalorder %s16, 0
    %p85 = por %p83, %p84
    %s87 = sadd.s32 %s86, 1
    %p90 = scmp.eq.s32.totalorder %s10, 1
    %p91 = scmp.ne.s32.totalorder %s86, %s88
    %p92 = scmp.eq.s32.totalorder %s10, 0
    %p93 = por %p91, %p92
    %p94 = scmp.ne.s32.totalorder %s86, %s88
    %p95 = scmp.eq.s32.totalorder %s15, 1
    %p96 = por %p94, %p95
    %p97 = scmp.ne.s32.totalorder %s88, %s89
    %p98 = scmp.eq.s32.totalorder %s15, 0
    %p99 = por %p97, %p98
    %p100 = scmp.ne.s32.totalorder %s88, %s89
    %p101 = scmp.eq.s32.totalorder %s16, 1
    %p102 = por %p100, %p101
    %p104 = scmp.ne.s32.totalorder %s89, %s103
    %p105 = scmp.eq.s32.totalorder %s16, 0
    %p106 = por %p104, %p105
    %s107 = ssub.s32 %s10, %s17
    %p108 = scmp.eq.s32.totalorder %s107, 0
    %s110 = sadd.s32 %s109, 1
    %s111 = scalar_select %p108, %s109, %s110
    %p114 = pneg %p108
    %p115 = scmp.eq.s32.totalorder %s10, 1
    %p116 = por %p114, %p115
    %p117 = scmp.ne.s32.totalorder %s109, %s112
    %p118 = scmp.eq.s32.totalorder %s10, 0
    %p119 = por %p117, %p118
    %p120 = scmp.ne.s32.totalorder %s109, %s112
    %p121 = scmp.eq.s32.totalorder %s15, 1
    %p122 = por %p120, %p121
    %p123 = scmp.ne.s32.totalorder %s112, %s113
    %p124 = scmp.eq.s32.totalorder %s15, 0
    %p125 = por %p123, %p124
    %p126 = scmp.ne.s32.totalorder %s112, %s113
    %p127 = scmp.eq.s32.totalorder %s16, 1
    %p128 = por %p126, %p127
    %p130 = scmp.ne.s32.totalorder %s113, %s129
    %p131 = scmp.eq.s32.totalorder %s16, 0
    %p132 = por %p130, %p131
    %p133 = scmp.le.s32.totalorder 1, %s10
    %p134 = scmp.lt.s32.totalorder %s10, 3
    %p135 = pnand %p133, %p134
    %p136 = pneg %p135
    // Predicated region
    $region9: #{tpu_custom_call.1} parent=5 // pred_check
      _
    $region10: #{tpu_custom_call.1} parent=5 // pred_check_branch
      %138 = sbr.rel (%p135) target = $region12
    $region11: #{tpu_custom_call.1} parent=5 // pred_region
      %s139 = ssub.s32 %s10, 1
      // Predicated region
      $region13: #{tpu_custom_call.1} parent=11 // pred_check
        %p140 = pneg %p57
      $region14: #{tpu_custom_call.1} parent=11 // pred_check_branch
        %142 = sbr.rel (%p140) target = $region16
      $region15: #{tpu_custom_call.1} parent=11 // pred_region
        _
      $region16: #{tpu_custom_call.1} parent=11 // pred_fallthru
        _
      // Predicated region
      $region17: #{tpu_custom_call.1} parent=11 // pred_check
        %p143 = pneg %p78
      $region18: #{tpu_custom_call.1} parent=11 // pred_check_branch
        %145 = sbr.rel (%p143) target = $region20
      $region19: #{tpu_custom_call.1} parent=11 // pred_region
        _
      $region20: #{tpu_custom_call.1} parent=11 // pred_fallthru
        _
      // Predicated region
      $region21: #{tpu_custom_call.1} parent=11 // pred_check
        %p146 = pneg %p99
      $region22: #{tpu_custom_call.1} parent=11 // pred_check_branch
        %148 = sbr.rel (%p146) target = $region24
      $region23: #{tpu_custom_call.1} parent=11 // pred_region
        _
      $region24: #{tpu_custom_call.1} parent=11 // pred_fallthru
        _
    $region12: #{tpu_custom_call.1} parent=5 // pred_fallthru
      _
    %p149 = scmp.lt.s32.totalorder %s10, 2
    // Predicated region
    $region25: #{tpu_custom_call.1} parent=5 // pred_check
      %p150 = pneg %p149
    $region26: #{tpu_custom_call.1} parent=5 // pred_check_branch
      %152 = sbr.rel (%p150) target = $region28
    $region27: #{tpu_custom_call.1} parent=5 // pred_region
      // Predicated region
      $region29: #{tpu_custom_call.1} parent=27 // pred_check
        %p153 = pneg %p30
      $region30: #{tpu_custom_call.1} parent=27 // pred_check_branch
        %155 = sbr.rel (%p153) target = $region32
      $region31: #{tpu_custom_call.1} parent=27 // pred_region
        %s156 = smul.u32 8, %s10
        %p157 = scmp.lt.s32.totalorder %s156, 15
        %s158 = scalar_select %p157, %s156, 15
        %s159 = smul.addr %s158, 2
        %s160 = smul.addr %s159, 8
        %s161 = scalar_lea.vmem %s0, %s160
        %s162 = smul.u32 8, %s10
      $region32: #{tpu_custom_call.1} parent=27 // pred_fallthru
        _
    $region28: #{tpu_custom_call.1} parent=5 // pred_fallthru
      _
    %p163 = scmp.le.s32.totalorder 1, %s10
    %p164 = scmp.lt.s32.totalorder %s10, 3
    %p165 = pnand %p163, %p164
    %p166 = pneg %p165
    // Predicated region
    $region33: #{tpu_custom_call.1} parent=5 // pred_check
      _
    $region34: #{tpu_custom_call.1} parent=5 // pred_check_branch
      %168 = sbr.rel (%p165) target = $region36
    $region35: #{tpu_custom_call.1} parent=5 // pred_region
      %s169 = ssub.s32 %s10, 1
      %s170 = smul.u32 8, %s15
      %p171 = scmp.lt.s32.totalorder %s170, 15
      %s172 = scalar_select %p171, %s170, 15
      %s173 = smul.addr %s172, 2
      %s174 = smul.addr %s173, 8
      %s175 = scalar_lea.vmem %s0, %s174
      %p176 = pneg %p36
      %p177 = pneg %p33
      %p178 = pneg %p57
      %p179 = pneg %p54
      %p180 = pneg %p78
      %p181 = pneg %p75
      %p182 = pneg %p99
      %p183 = pneg %p96
      %p184 = pneg %p125
      %p185 = pneg %p122
      %s186 = smul.u32 8, %s15
      %p187 = scmp.lt.s32.totalorder %s186, 15
      %s188 = scalar_select %p187, %s186, 15
      %s189 = smul.addr %s188, 8
      %s190 = scalar_lea.vmem %s4, %s189
      %s191 = smul.u32 8, %s15
      %p192 = scmp.lt.s32.totalorder %s191, 15
      %s193 = scalar_select %p192, %s191, 15
      %s194 = smul.addr %s193, 2
      %s195 = smul.addr %s194, 8
      %s196 = scalar_lea.vmem %s0, %s195
      %s197 = smul.u32 8, %s15
      %s198 = smul.u32 8, %s15
      %p199 = scmp.lt.s32.totalorder %s198, 15
      %s200 = scalar_select %p199, %s198, 15
      %s201 = smul.addr %s200, 8
      %s202 = scalar_lea.vmem %s4, %s201
      %s203 = smul.u32 8, %s15
      %v204 = vld [vmem:[%s196] sm:$0xff]
      %v205 = vld [vmem:[%s196 + $0x10] sm:$0xff]
      %v206 = vld [vmem:[%s196 + $0x20] sm:$0xff]
      %v207 = vld [vmem:[%s196 + $0x30] sm:$0xff]
      %v208 = vld [vmem:[%s196 + $0x40] sm:$0xff]
      %v209 = vld [vmem:[%s196 + $0x50] sm:$0xff]
      %v210 = vld [vmem:[%s196 + $0x60] sm:$0xff]
      %v211 = vld [vmem:[%s196 + $0x70] sm:$0xff]
      %s212 = scalar_lea.vmem %s196, 8
      %v213 = vld [vmem:[%s212] sm:$0xff]
      %v214 = vld [vmem:[%s212 + $0x10] sm:$0xff]
      %v215 = vld [vmem:[%s212 + $0x20] sm:$0xff]
      %v216 = vld [vmem:[%s212 + $0x30] sm:$0xff]
      %v217 = vld [vmem:[%s212 + $0x40] sm:$0xff]
      %v218 = vld [vmem:[%s212 + $0x50] sm:$0xff]
      %v219 = vld [vmem:[%s212 + $0x60] sm:$0xff]
      %v220 = vld [vmem:[%s212 + $0x70] sm:$0xff]
      %v221 = vld [vmem:[%s1] sm:$0xff]
      %s222 = scalar_lea.vmem %s1, 8
      %v223 = vld [vmem:[%s222] sm:$0xff]
      %vm224 = vcmask 64512
      %v226 = vsel %vm224, %v213, 0
      %v229 = vsel %vm224, %v214, 0
      %v232 = vsel %vm224, %v215, 0
      %v235 = vsel %vm224, %v216, 0
      %v238 = vsel %vm224, %v217, 0
      %v241 = vsel %vm224, %v218, 0
      %v244 = vsel %vm224, %v219, 0
      %v247 = vsel %vm224, %v220, 0
      %249 = vmatprep.subr.mxu0 0.0
      %250 = vmatpush1.msra.mxu0 %v223
      %251 = vmatprep.subr.mxu0 0.0
      %252 = vmatpush1.msra.mxu0 0.0
      %253 = vmatprep.subr.mxu0 0.0
      %254 = vmatpush1.msra.mxu0 0.0
      %255 = vmatprep.subr.mxu0 0.0
      %256 = vmatpush1.msra.mxu0 0.0
      %257 = vmatprep.subr.mxu0 0.0
      %258 = vmatpush1.msra.mxu0 0.0
      %259 = vmatprep.subr.mxu0 0.0
      %260 = vmatpush1.msra.mxu0 0.0
      %261 = vmatprep.subr.mxu0 0.0
      %262 = vmatpush1.msra.mxu0 0.0
      %263 = vmatprep.subr.mxu0 0.0
      %264 = vmatpush1.msra.mxu0 0.0
      %265 = vmatprep.subr.mxu0 0.0
      %266 = vmatpush1.msra.mxu0 0.0
      %267 = vmatprep.subr.mxu0 0.0
      %268 = vmatpush1.msra.mxu0 0.0
      %269 = vmatprep.subr.mxu0 0.0
      %270 = vmatpush1.msra.mxu0 0.0
      %271 = vmatprep.subr.mxu0 0.0
      %272 = vmatpush1.msra.mxu0 0.0
      %273 = vmatprep.subr.mxu0 0.0
      %274 = vmatpush1.msra.mxu0 0.0
      %275 = vmatprep.subr.mxu0 0.0
      %276 = vmatpush1.msra.mxu0 0.0
      %277 = vmatprep.subr.mxu0 0.0
      %278 = vmatpush1.msra.mxu0 0.0
      %279 = vmatprep.subr.mxu0 0.0
      %280 = vmatpush1.msra.mxu0 0.0
      %281 = vmatprep.subr.mxu0 0.0
      %282 = vmatpush1.msra.mxu0 0.0
      %283 = vmatprep.subr.mxu0 0.0
      %284 = vmatpush1.msra.mxu0 0.0
      %285 = vmatprep.subr.mxu0 0.0
      %286 = vmatpush1.msra.mxu0 0.0
      %287 = vmatprep.subr.mxu0 0.0
      %288 = vmatpush1.msra.mxu0 0.0
      %289 = vmatprep.subr.mxu0 0.0
      %290 = vmatpush1.msra.mxu0 0.0
      %291 = vmatprep.subr.mxu0 0.0
      %292 = vmatpush1.msra.mxu0 0.0
      %293 = vmatprep.subr.mxu0 0.0
      %294 = vmatpush1.msra.mxu0 0.0
      %295 = vmatprep.subr.mxu0 0.0
      %296 = vmatpush1.msra.mxu0 0.0
      %297 = vmatprep.subr.mxu0 0.0
      %298 = vmatpush1.msra.mxu0 0.0
      %299 = vmatprep.subr.mxu0 0.0
      %300 = vmatpush1.msra.mxu0 0.0
      %301 = vmatprep.subr.mxu0 0.0
      %302 = vmatpush1.msra.mxu0 0.0
      %303 = vmatprep.subr.mxu0 0.0
      %304 = vmatpush1.msra.mxu0 0.0
      %305 = vmatprep.subr.mxu0 0.0
      %306 = vmatpush1.msra.mxu0 0.0
      %307 = vmatprep.subr.mxu0 0.0
      %308 = vmatpush1.msra.mxu0 0.0
      %309 = vmatprep.subr.mxu0 0.0
      %310 = vmatpush1.msra.mxu0 0.0
      %311 = vmatprep.subr.mxu0 0.0
      %312 = vmatpush1.msra.mxu0 0.0
      %313 = vmatprep.mubr.f32.mxu0 0.0
      %314 = vmatmul.mubr.f32.gmra.mrb[0].mxu0 %v226
      %v315 = vpop.f32.mrb[0].mxu0
      %v316 = vadd.f32 0.0, %v315
      %v317 = vpop.f32.mrb[0].mxu0
      %318 = vmatprep.mubr.f32.mxu0 0.0
      %319 = vmatmul.mubr.f32.gmra.mrb[0].mxu0 %v229
      %v320 = vpop.f32.mrb[0].mxu0
      %v321 = vadd.f32 0.0, %v320
      %v322 = vpop.f32.mrb[0].mxu0
      %323 = vmatprep.mubr.f32.mxu0 0.0
      %324 = vmatmul.mubr.f32.gmra.mrb[0].mxu0 %v232
      %v325 = vpop.f32.mrb[0].mxu0
      %v326 = vadd.f32 0.0, %v325
      %v327 = vpop.f32.mrb[0].mxu0
      %328 = vmatprep.mubr.f32.mxu0 0.0
      %329 = vmatmul.mubr.f32.gmra.mrb[0].mxu0 %v235
      %v330 = vpop.f32.mrb[0].mxu0
      %v331 = vadd.f32 0.0, %v330
      %v332 = vpop.f32.mrb[0].mxu0
      %333 = vmatprep.mubr.f32.mxu0 0.0
      %334 = vmatmul.mubr.f32.gmra.mrb[0].mxu0 %v238
      %v335 = vpop.f32.mrb[0].mxu0
      %v336 = vadd.f32 0.0, %v335
      %v337 = vpop.f32.mrb[0].mxu0
      %338 = vmatprep.mubr.f32.mxu0 0.0
      %339 = vmatmul.mubr.f32.gmra.mrb[0].mxu0 %v241
      %v340 = vpop.f32.mrb[0].mxu0
      %v341 = vadd.f32 0.0, %v340
      %v342 = vpop.f32.mrb[0].mxu0
      %343 = vmatprep.mubr.f32.mxu0 0.0
      %344 = vmatmul.mubr.f32.gmra.mrb[0].mxu0 %v244
      %v345 = vpop.f32.mrb[0].mxu0
      %v346 = vadd.f32 0.0, %v345
      %v347 = vpop.f32.mrb[0].mxu0
      %348 = vmatprep.mubr.f32.mxu0 0.0
      %349 = vmatmul.mubr.f32.gmra.mrb[0].mxu0 %v247
      %v350 = vpop.f32.mrb[0].mxu0
      %v351 = vadd.f32 0.0, %v350
      %v352 = vpop.f32.mrb[0].mxu0
      %353 = vdwg.mxu0
      %v355 = vsel %vm224, %v204, 0
      %v358 = vsel %vm224, %v205, 0
      %v361 = vsel %vm224, %v206, 0
      %v364 = vsel %vm224, %v207, 0
      %v367 = vsel %vm224, %v208, 0
      %v370 = vsel %vm224, %v209, 0
      %v373 = vsel %vm224, %v210, 0
      %v376 = vsel %vm224, %v211, 0
      %378 = vmatprep.subr.mxu0 0.0
      %379 = vmatpush1.msra.mxu0 %v221
      %380 = vmatprep.subr.mxu0 0.0
      %381 = vmatpush1.msra.mxu0 0.0
      %382 = vmatprep.subr.mxu0 0.0
      %383 = vmatpush1.msra.mxu0 0.0
      %384 = vmatprep.subr.mxu0 0.0
      %385 = vmatpush1.msra.mxu0 0.0
      %386 = vmatprep.subr.mxu0 0.0
      %387 = vmatpush1.msra.mxu0 0.0
      %388 = vmatprep.subr.mxu0 0.0
      %389 = vmatpush1.msra.mxu0 0.0
      %390 = vmatprep.subr.mxu0 0.0
      %391 = vmatpush1.msra.mxu0 0.0
      %392 = vmatprep.subr.mxu0 0.0
      %393 = vmatpush1.msra.mxu0 0.0
      %394 = vmatprep.subr.mxu0 0.0
      %395 = vmatpush1.msra.mxu0 0.0
      %396 = vmatprep.subr.mxu0 0.0
      %397 = vmatpush1.msra.mxu0 0.0
      %398 = vmatprep.subr.mxu0 0.0
      %399 = vmatpush1.msra.mxu0 0.0
      %400 = vmatprep.subr.mxu0 0.0
      %401 = vmatpush1.msra.mxu0 0.0
      %402 = vmatprep.subr.mxu0 0.0
      %403 = vmatpush1.msra.mxu0 0.0
      %404 = vmatprep.subr.mxu0 0.0
      %405 = vmatpush1.msra.mxu0 0.0
      %406 = vmatprep.subr.mxu0 0.0
      %407 = vmatpush1.msra.mxu0 0.0
      %408 = vmatprep.subr.mxu0 0.0
      %409 = vmatpush1.msra.mxu0 0.0
      %410 = vmatprep.subr.mxu0 0.0
      %411 = vmatpush1.msra.mxu0 0.0
      %412 = vmatprep.subr.mxu0 0.0
      %413 = vmatpush1.msra.mxu0 0.0
      %414 = vmatprep.subr.mxu0 0.0
      %415 = vmatpush1.msra.mxu0 0.0
      %416 = vmatprep.subr.mxu0 0.0
      %417 = vmatpush1.msra.mxu0 0.0
      %418 = vmatprep.subr.mxu0 0.0
      %419 = vmatpush1.msra.mxu0 0.0
      %420 = vmatprep.subr.mxu0 0.0
      %421 = vmatpush1.msra.mxu0 0.0
      %422 = vmatprep.subr.mxu0 0.0
      %423 = vmatpush1.msra.mxu0 0.0
      %424 = vmatprep.subr.mxu0 0.0
      %425 = vmatpush1.msra.mxu0 0.0
      %426 = vmatprep.subr.mxu0 0.0
      %427 = vmatpush1.msra.mxu0 0.0
      %428 = vmatprep.subr.mxu0 0.0
      %429 = vmatpush1.msra.mxu0 0.0
      %430 = vmatprep.subr.mxu0 0.0
      %431 = vmatpush1.msra.mxu0 0.0
      %432 = vmatprep.subr.mxu0 0.0
      %433 = vmatpush1.msra.mxu0 0.0
      %434 = vmatprep.subr.mxu0 0.0
      %435 = vmatpush1.msra.mxu0 0.0
      %436 = vmatprep.subr.mxu0 0.0
      %437 = vmatpush1.msra.mxu0 0.0
      %438 = vmatprep.subr.mxu0 0.0
      %439 = vmatpush1.msra.mxu0 0.0
      %440 = vmatprep.subr.mxu0 0.0
      %441 = vmatpush1.msra.mxu0 0.0
      %442 = vmatprep.mubr.f32.mxu0 0.0
      %443 = vmatmul.mubr.f32.gmra.mrb[0].mxu0 %v355
      %v444 = vpop.f32.mrb[0].mxu0
      %v445 = vadd.f32 %v316, %v444
      %v446 = vpop.f32.mrb[0].mxu0
      %447 = vmatprep.mubr.f32.mxu0 0.0
      %448 = vmatmul.mubr.f32.gmra.mrb[0].mxu0 %v358
      %v449 = vpop.f32.mrb[0].mxu0
      %v450 = vadd.f32 %v321, %v449
      %v451 = vpop.f32.mrb[0].mxu0
      %452 = vmatprep.mubr.f32.mxu0 0.0
      %453 = vmatmul.mubr.f32.gmra.mrb[0].mxu0 %v361
      %v454 = vpop.f32.mrb[0].mxu0
      %v455 = vadd.f32 %v326, %v454
      %v456 = vpop.f32.mrb[0].mxu0
      %457 = vmatprep.mubr.f32.mxu0 0.0
      %458 = vmatmul.mubr.f32.gmra.mrb[0].mxu0 %v364
      %v459 = vpop.f32.mrb[0].mxu0
      %v460 = vadd.f32 %v331, %v459
      %v461 = vpop.f32.mrb[0].mxu0
      %462 = vmatprep.mubr.f32.mxu0 0.0
      %463 = vmatmul.mubr.f32.gmra.mrb[0].mxu0 %v367
      %v464 = vpop.f32.mrb[0].mxu0
      %v465 = vadd.f32 %v336, %v464
      %v466 = vpop.f32.mrb[0].mxu0
      %467 = vmatprep.mubr.f32.mxu0 0.0
      %468 = vmatmul.mubr.f32.gmra.mrb[0].mxu0 %v370
      %v469 = vpop.f32.mrb[0].mxu0
      %v470 = vadd.f32 %v341, %v469
      %v471 = vpop.f32.mrb[0].mxu0
      %472 = vmatprep.mubr.f32.mxu0 0.0
      %473 = vmatmul.mubr.f32.gmra.mrb[0].mxu0 %v373
      %v474 = vpop.f32.mrb[0].mxu0
      %v475 = vadd.f32 %v346, %v474
      %v476 = vpop.f32.mrb[0].mxu0
      %477 = vmatprep.mubr.f32.mxu0 0.0
      %478 = vmatmul.mubr.f32.gmra.mrb[0].mxu0 %v376
      %v479 = vpop.f32.mrb[0].mxu0
      %v480 = vadd.f32 %v351, %v479
      %v481 = vpop.f32.mrb[0].mxu0
      %482 = vdwg.mxu0
      %v483 = vsel %vm224, %v204, 0.0
      %484 = vadd.xlane.f32.xlu0 %v483
      %v485 = vpop.xlane.xlu0 %484
      %v486 = vsel %vm224, %v205, 0.0
      %487 = vadd.xlane.f32.xlu0 %v486
      %v488 = vpop.xlane.xlu0 %487
      %v489 = vsel %vm224, %v206, 0.0
      %490 = vadd.xlane.f32.xlu0 %v489
      %v491 = vpop.xlane.xlu0 %490
      %v492 = vsel %vm224, %v207, 0.0
      %493 = vadd.xlane.f32.xlu0 %v492
      %v494 = vpop.xlane.xlu0 %493
      %v495 = vsel %vm224, %v208, 0.0
      %496 = vadd.xlane.f32.xlu0 %v495
      %v497 = vpop.xlane.xlu0 %496
      %v498 = vsel %vm224, %v209, 0.0
      %499 = vadd.xlane.f32.xlu0 %v498
      %v500 = vpop.xlane.xlu0 %499
      %v501 = vsel %vm224, %v210, 0.0
      %502 = vadd.xlane.f32.xlu0 %v501
      %v503 = vpop.xlane.xlu0 %502
      %v504 = vsel %vm224, %v211, 0.0
      %505 = vadd.xlane.f32.xlu0 %v504
      %v506 = vpop.xlane.xlu0 %505
      %v507 = vsel %vm224, %v213, 0.0
      %508 = vadd.xlane.f32.xlu0 %v507
      %v509 = vpop.xlane.xlu0 %508
      %v510 = vsel %vm224, %v214, 0.0
      %511 = vadd.xlane.f32.xlu0 %v510
      %v512 = vpop.xlane.xlu0 %511
      %v513 = vsel %vm224, %v215, 0.0
      %514 = vadd.xlane.f32.xlu0 %v513
      %v515 = vpop.xlane.xlu0 %514
      %v516 = vsel %vm224, %v216, 0.0
      %517 = vadd.xlane.f32.xlu0 %v516
      %v518 = vpop.xlane.xlu0 %517
      %v519 = vsel %vm224, %v217, 0.0
      %520 = vadd.xlane.f32.xlu0 %v519
      %v521 = vpop.xlane.xlu0 %520
      %v522 = vsel %vm224, %v218, 0.0
      %523 = vadd.xlane.f32.xlu0 %v522
      %v524 = vpop.xlane.xlu0 %523
      %v525 = vsel %vm224, %v219, 0.0
      %526 = vadd.xlane.f32.xlu0 %v525
      %v527 = vpop.xlane.xlu0 %526
      %v528 = vsel %vm224, %v220, 0.0
      %529 = vadd.xlane.f32.xlu0 %v528
      %v530 = vpop.xlane.xlu0 %529
      %v531 = vadd.f32 %v485, %v509
      %v532 = vadd.f32 %v488, %v512
      %v533 = vadd.f32 %v491, %v515
      %v534 = vadd.f32 %v494, %v518
      %v535 = vadd.f32 %v497, %v521
      %v536 = vadd.f32 %v500, %v524
      %v537 = vadd.f32 %v503, %v527
      %v538 = vadd.f32 %v506, %v530
      %v539 = vmul.f32 %v204, %v204
      %v540 = vmul.f32 %v205, %v205
      %v541 = vmul.f32 %v206, %v206
      %v542 = vmul.f32 %v207, %v207
      %v543 = vmul.f32 %v208, %v208
      %v544 = vmul.f32 %v209, %v209
      %v545 = vmul.f32 %v210, %v210
      %v546 = vmul.f32 %v211, %v211
      %v547 = vsel %vm224, %v539, 0.0
      %548 = vadd.xlane.f32.xlu0 %v547
      %v549 = vpop.xlane.xlu0 %548
      %v550 = vsel %vm224, %v540, 0.0
      %551 = vadd.xlane.f32.xlu0 %v550
      %v552 = vpop.xlane.xlu0 %551
      %v553 = vsel %vm224, %v541, 0.0
      %554 = vadd.xlane.f32.xlu0 %v553
      %v555 = vpop.xlane.xlu0 %554
      %v556 = vsel %vm224, %v542, 0.0
      %557 = vadd.xlane.f32.xlu0 %v556
      %v558 = vpop.xlane.xlu0 %557
      %v559 = vsel %vm224, %v543, 0.0
      %560 = vadd.xlane.f32.xlu0 %v559
      %v561 = vpop.xlane.xlu0 %560
      %v562 = vsel %vm224, %v544, 0.0
      %563 = vadd.xlane.f32.xlu0 %v562
      %v564 = vpop.xlane.xlu0 %563
      %v565 = vsel %vm224, %v545, 0.0
      %566 = vadd.xlane.f32.xlu0 %v565
      %v567 = vpop.xlane.xlu0 %566
      %v568 = vsel %vm224, %v546, 0.0
      %569 = vadd.xlane.f32.xlu0 %v568
      %v570 = vpop.xlane.xlu0 %569
      %v571 = vmul.f32 %v213, %v213
      %v572 = vmul.f32 %v214, %v214
      %v573 = vmul.f32 %v215, %v215
      %v574 = vmul.f32 %v216, %v216
      %v575 = vmul.f32 %v217, %v217
      %v576 = vmul.f32 %v218, %v218
      %v577 = vmul.f32 %v219, %v219
      %v578 = vmul.f32 %v220, %v220
      %v579 = vsel %vm224, %v571, 0.0
      %580 = vadd.xlane.f32.xlu0 %v579
      %v581 = vpop.xlane.xlu0 %580
      %v582 = vsel %vm224, %v572, 0.0
      %583 = vadd.xlane.f32.xlu0 %v582
      %v584 = vpop.xlane.xlu0 %583
      %v585 = vsel %vm224, %v573, 0.0
      %586 = vadd.xlane.f32.xlu0 %v585
      %v587 = vpop.xlane.xlu0 %586
      %v588 = vsel %vm224, %v574, 0.0
      %589 = vadd.xlane.f32.xlu0 %v588
      %v590 = vpop.xlane.xlu0 %589
      %v591 = vsel %vm224, %v575, 0.0
      %592 = vadd.xlane.f32.xlu0 %v591
      %v593 = vpop.xlane.xlu0 %592
      %v594 = vsel %vm224, %v576, 0.0
      %595 = vadd.xlane.f32.xlu0 %v594
      %v596 = vpop.xlane.xlu0 %595
      %v597 = vsel %vm224, %v577, 0.0
      %598 = vadd.xlane.f32.xlu0 %v597
      %v599 = vpop.xlane.xlu0 %598
      %v600 = vsel %vm224, %v578, 0.0
      %601 = vadd.xlane.f32.xlu0 %v600
      %v602 = vpop.xlane.xlu0 %601
      %v603 = vadd.f32 %v549, %v581
      %v604 = vadd.f32 %v552, %v584
      %v605 = vadd.f32 %v555, %v587
      %v606 = vadd.f32 %v558, %v590
      %v607 = vadd.f32 %v561, %v593
      %v608 = vadd.f32 %v564, %v596
      %v609 = vadd.f32 %v567, %v599
      %v610 = vadd.f32 %v570, %v602
      %v611 = vmul.f32 %v531, 0.0625
      %v612 = vmul.f32 %v532, 0.0625
      %v613 = vmul.f32 %v533, 0.0625
      %v614 = vmul.f32 %v534, 0.0625
      %v615 = vmul.f32 %v535, 0.0625
      %v616 = vmul.f32 %v536, 0.0625
      %v617 = vmul.f32 %v537, 0.0625
      %v618 = vmul.f32 %v538, 0.0625
      %v619 = vmul.f32 %v603, 0.0625
      %v620 = vmul.f32 %v604, 0.0625
      %v621 = vmul.f32 %v605, 0.0625
      %v622 = vmul.f32 %v606, 0.0625
      %v623 = vmul.f32 %v607, 0.0625
      %v624 = vmul.f32 %v608, 0.0625
      %v625 = vmul.f32 %v609, 0.0625
      %v626 = vmul.f32 %v610, 0.0625
      %v627 = vmul.f32 %v611, %v611
      %v628 = vmul.f32 %v612, %v612
      %v629 = vmul.f32 %v613, %v613
      %v630 = vmul.f32 %v614, %v614
      %v631 = vmul.f32 %v615, %v615
      %v632 = vmul.f32 %v616, %v616
      %v633 = vmul.f32 %v617, %v617
      %v634 = vmul.f32 %v618, %v618
      %v635 = vsub.f32 %v619, %v627
      %v636 = vsub.f32 %v620, %v628
      %v637 = vsub.f32 %v621, %v629
      %v638 = vsub.f32 %v622, %v630
      %v639 = vsub.f32 %v623, %v631
      %v640 = vsub.f32 %v624, %v632
      %v641 = vsub.f32 %v625, %v633
      %v642 = vsub.f32 %v626, %v634
      %v643 = vmax.f32 %v635, 0.0
      %v644 = vmax.f32 %v636, 0.0
      %v645 = vmax.f32 %v637, 0.0
      %v646 = vmax.f32 %v638, 0.0
      %v647 = vmax.f32 %v639, 0.0
      %v648 = vmax.f32 %v640, 0.0
      %v649 = vmax.f32 %v641, 0.0
      %v650 = vmax.f32 %v642, 0.0
      %v651 = vadd.f32 %v643, 1e-05
      %v652 = vadd.f32 %v644, 1e-05
      %v653 = vadd.f32 %v645, 1e-05
      %v654 = vadd.f32 %v646, 1e-05
      %v655 = vadd.f32 %v647, 1e-05
      %v656 = vadd.f32 %v648, 1e-05
      %v657 = vadd.f32 %v649, 1e-05
      %v658 = vadd.f32 %v650, 1e-05
      %v659 = vrsqrt.pop %v651
      %v660 = vrsqrt.pop %v652
      %v661 = vrsqrt.pop %v653
      %v662 = vrsqrt.pop %v654
      %v663 = vrsqrt.pop %v655
      %v664 = vrsqrt.pop %v656
      %v665 = vrsqrt.pop %v657
      %v666 = vrsqrt.pop %v658
      %v667 = vld [vmem:[%s2] sm:$0x1]
      %v669 = vlaneseq
      %v670 = vshrl.u32 %v669, 7
      %v671 = vsub.s32 0, %v670
      %v672 = vrot.slane %v667, %v671
      %v674 = vmul.f32 %v611, %v672
      %v675 = vmul.f32 %v612, %v672
      %v676 = vmul.f32 %v613, %v672
      %v677 = vmul.f32 %v614, %v672
      %v678 = vmul.f32 %v615, %v672
      %v679 = vmul.f32 %v616, %v672
      %v680 = vmul.f32 %v617, %v672
      %v681 = vmul.f32 %v618, %v672
      %v682 = vsub.f32 %v445, %v674
      %v683 = vsub.f32 %v450, %v675
      %v684 = vsub.f32 %v455, %v676
      %v685 = vsub.f32 %v460, %v677
      %v686 = vsub.f32 %v465, %v678
      %v687 = vsub.f32 %v470, %v679
      %v688 = vsub.f32 %v475, %v680
      %v689 = vsub.f32 %v480, %v681
      %v690 = vmul.f32 %v682, %v659
      %v691 = vmul.f32 %v683, %v660
      %v692 = vmul.f32 %v684, %v661
      %v693 = vmul.f32 %v685, %v662
      %v694 = vmul.f32 %v686, %v663
      %v695 = vmul.f32 %v687, %v664
      %v696 = vmul.f32 %v688, %v665
      %v697 = vmul.f32 %v689, %v666
      %v698 = vld [vmem:[%s3] sm:$0x1]
      %v700 = vlaneseq
      %v701 = vshrl.u32 %v700, 7
      %v702 = vsub.s32 0, %v701
      %v703 = vrot.slane %v698, %v702
      %v705 = vadd.f32 %v690, %v703
      %v706 = vadd.f32 %v691, %v703
      %v707 = vadd.f32 %v692, %v703
      %v708 = vadd.f32 %v693, %v703
      %v709 = vadd.f32 %v694, %v703
      %v710 = vadd.f32 %v695, %v703
      %v711 = vadd.f32 %v696, %v703
      %v712 = vadd.f32 %v697, %v703
      %713 = vst.msk [vmem:[%s202] sm:$0xff] %vm224, %v705
      %714 = vst.msk [vmem:[%s202 + $0x8] sm:$0xff] %vm224, %v706
      %715 = vst.msk [vmem:[%s202 + $0x10] sm:$0xff] %vm224, %v707
      %716 = vst.msk [vmem:[%s202 + $0x18] sm:$0xff] %vm224, %v708
      %717 = vst.msk [vmem:[%s202 + $0x20] sm:$0xff] %vm224, %v709
      %718 = vst.msk [vmem:[%s202 + $0x28] sm:$0xff] %vm224, %v710
      %719 = vst.msk [vmem:[%s202 + $0x30] sm:$0xff] %vm224, %v711
      %720 = vst.msk [vmem:[%s202 + $0x38] sm:$0xff] %vm224, %v712
      %s721 = smul.u32 8, %s15
      %p722 = scmp.lt.s32.totalorder %s721, 15
      %s723 = scalar_select %p722, %s721, 15
      %s724 = smul.addr %s723, 8
      %s725 = scalar_lea.vmem %s4, %s724
      // Predicated region
      $region37: #{tpu_custom_call.1} parent=35 // pred_check
        %p726 = pneg %p122
      $region38: #{tpu_custom_call.1} parent=35 // pred_check_branch
        %728 = sbr.rel (%p726) target = $region40
      $region39: #{tpu_custom_call.1} parent=35 // pred_region
        %s729 = smul.u32 8, %s15
      $region40: #{tpu_custom_call.1} parent=35 // pred_fallthru
        _
    $region36: #{tpu_custom_call.1} parent=5 // pred_fallthru
      _
    %p730 = scmp.le.s32.totalorder 2, %s10
    // Predicated region
    $region41: #{tpu_custom_call.1} parent=5 // pred_check
      %p731 = pneg %p730
    $region42: #{tpu_custom_call.1} parent=5 // pred_check_branch
      %733 = sbr.rel (%p731) target = $region44
    $region43: #{tpu_custom_call.1} parent=5 // pred_region
      %s734 = ssub.s32 %s10, 2
      // Predicated region
      $region45: #{tpu_custom_call.1} parent=43 // pred_check
        %p735 = pneg %p128
      $region46: #{tpu_custom_call.1} parent=43 // pred_check_branch
        %737 = sbr.rel (%p735) target = $region48
      $region47: #{tpu_custom_call.1} parent=43 // pred_region
        %s738 = smul.u32 8, %s16
        %p739 = scmp.lt.s32.totalorder %s738, 15
        %s740 = scalar_select %p739, %s738, 15
        %s741 = smul.addr %s740, 8
        %s742 = scalar_lea.vmem %s4, %s741
      $region48: #{tpu_custom_call.1} parent=43 // pred_fallthru
        _
    $region44: #{tpu_custom_call.1} parent=5 // pred_fallthru
      _
  $region6: #{tpu_custom_call.1} parent=0 // loop_footer
    %s14 = sadd.s32 1, %s10
  $region7: #{tpu_custom_call.1} parent=0 // loop_footer_branch
    %9 = sbr.rel target = $region3
  $region8: #{tpu_custom_call.1} parent=0 // loop_exit
    _

</llo_original>
